<compile_context>
chip_gen: v7x
topology: tpu7x:2x2x1
jax: 0.10.0
libtpu: 0.0.40
codegen_flags: <defaults>
</compile_context>

<pallas_src>
import functools

import jax
import jax.numpy as jnp
from jax import lax
from jax.experimental import pallas as pl
from jax.experimental.pallas import tpu as pltpu

# Contract the last dim of both operands: (M, K) x (N, K) -> (M, N). No w.T.
_DN = (((1,), (1,)), ((), ()))


# ----------------------------------------------------------------------------
# Kernels
# ----------------------------------------------------------------------------
def _identity_kernel(x_ref, wmu_ref, wsig_ref, eps_in_ref, eps_out_ref, b_ref,
                     o_ref, acc_ref):
    """acc += x @ Wmu.T + ((x*eps_in) @ Wsig.T) * eps_out ; +bias at last K."""
    k = pl.program_id(2)

    @pl.when(k == 0)
    def _():
        acc_ref[...] = jnp.zeros_like(acc_ref)

    x = x_ref[...]                                            # (tm, tk)
    mu_part = lax.dot_general(x, wmu_ref[...], _DN,
                              preferred_element_type=jnp.float32)
    sig_part = lax.dot_general(x * eps_in_ref[...], wsig_ref[...], _DN,
                               preferred_element_type=jnp.float32)
    acc_ref[...] += mu_part + sig_part * eps_out_ref[...]     # (1, tn) bcast

    @pl.when(k == pl.num_programs(2) - 1)
    def _():
        o_ref[...] = (acc_ref[...] + b_ref[...]).astype(o_ref.dtype)


def _build_w_kernel(wmu_ref, wsig_ref, eps_out_ref, eps_in_ref, w_ref):
    """Noisy weight tile: W = mu + sigma * (eps_out column * eps_in row)."""
    w_ref[...] = wmu_ref[...] + wsig_ref[...] * (eps_out_ref[...] *
                                                 eps_in_ref[...])


def _matmul_bias_kernel(x_ref, w_ref, b_ref, o_ref, acc_ref):
    """Single-weight matmul: acc += x @ W.T ; +bias at last K step."""
    k = pl.program_id(2)

    @pl.when(k == 0)
    def _():
        acc_ref[...] = jnp.zeros_like(acc_ref)

    acc_ref[...] += lax.dot_general(x_ref[...], w_ref[...], _DN,
                                    preferred_element_type=jnp.float32)

    @pl.when(k == pl.num_programs(2) - 1)
    def _():
        o_ref[...] = (acc_ref[...] + b_ref[...]).astype(o_ref.dtype)


# ----------------------------------------------------------------------------
# Helpers
# ----------------------------------------------------------------------------
def _round_up(x, m):
    return ((x + m - 1) // m) * m


def _pad2(a, rows, cols):
    return jnp.pad(a, ((0, rows - a.shape[0]), (0, cols - a.shape[1])))


def _pad1(a, n):
    return jnp.pad(a, (0, n - a.shape[0]))


def _choose_m_tile(dim, max_tile):
    """M-tile (multiple of 8) and padded dim (multiple of the tile)."""
    tile = max_tile if dim > max_tile else _round_up(dim, 8)
    return tile, _round_up(dim, tile)


def _pick_divisor_tile(padded_dim, max_tile, align=128):
    """Largest multiple of `align` that divides padded_dim and is <= max_tile."""
    t = min(max_tile, padded_dim)
    t -= t % align
    t = max(t, align)
    while padded_dim % t:
        t -= align
    return t


def _hw_config():
    """Generation-gated knobs (v5e/v6e: 128 MiB VMEM, v7x: 64 MiB per TC)."""
    try:
        vmem = int(pltpu.get_tpu_info().vmem_capacity_bytes)
    except Exception:
        vmem = 64 * 1024 * 1024  # conservative fallback: assume v7x-sized VMEM
    if vmem >= 100 * 1024 * 1024:       # v5e / v6e
        return {"max_tn": 1024, "max_tk": 1024,
                "vmem_limit": 80 * 1024 * 1024, "big_vmem": True}
    # v7x: smaller tiles, keep well under the 64 MiB ceiling.
    return {"max_tn": 512, "max_tk": 512,
            "vmem_limit": 48 * 1024 * 1024, "big_vmem": False}


def _megacore_split_n(tn, Op, grid_m, big_vmem):
    """v7x shards 'parallel' grid axes over 2 TensorCores; avoid (1,1,K)."""
    if big_vmem or grid_m * (Op // tn) >= 2:
        return tn
    if tn % 256 == 0:
        return tn // 2        # still a multiple of 128 dividing Op
    if Op >= 256:
        return 128
    return tn


def pad_noisy_linear_params(weight_mu, weight_sigma, bias_mu, bias_sigma):
    """Pad parameters ONCE (at init / after an optimizer step) to lane-aligned
    shapes, so the forward never re-pads the (O, I) weight matrices."""
    O, I = weight_mu.shape
    Op, Ip = _round_up(O, 128), _round_up(I, 128)
    return (_pad2(weight_mu, Op, Ip), _pad2(weight_sigma, Op, Ip),
            _pad1(bias_mu, Op), _pad1(bias_sigma, Op))


# ----------------------------------------------------------------------------
# Forward
# ----------------------------------------------------------------------------
@functools.partial(jax.jit, static_argnames=("fuse_weight",))
def noisy_linear(x, weight_mu_p, weight_sigma_p, bias_mu_p, bias_sigma_p,
                 eps_in, eps_out, *, fuse_weight=None):
    """Factorized-noise NoisyLinear forward.

    x: (B, I); weight_*_p: (Op, Ip) pre-padded via pad_noisy_linear_params;
    bias_*_p: (Op,) pre-padded; eps_in: (I,); eps_out: (O,).
    fuse_weight=None auto-selects: materialized noisy-W single matmul for
    B >= 256, two-matmul identity form (never builds the noisy W) otherwise.
    """
    B, I = x.shape
    O = eps_out.shape[0]
    Op, Ip = weight_mu_p.shape
    assert eps_in.shape[0] == I and Ip >= I and Op >= O

    if fuse_weight is None:
        fuse_weight = B >= 256

    cfg = _hw_config()

    tn = _pick_divisor_tile(Op, cfg["max_tn"])
    tk = _pick_divisor_tile(Ip, cfg["max_tk"])
    max_tm = 512 if fuse_weight else 256
    tm, Bp = _choose_m_tile(B, max_tm)
    grid_m = Bp // tm
    tn = _megacore_split_n(tn, Op, grid_m, cfg["big_vmem"])
    grid = (grid_m, Op // tn, Ip // tk)

    # Per-call padding of the *small* operands only (activations, noise
    # vectors, bias row); padded sigma/eps/x regions contribute nothing.
    xp = _pad2(x, Bp, Ip)
    eps_in_row = _pad1(eps_in, Ip).reshape(1, Ip)
    eps_out_p = _pad1(eps_out, Op)
    # Noisy bias is O(O) glue -> plain JAX in the wrapper, row layout (1, Op).
    b_row = (bias_mu_p + bias_sigma_p * eps_out_p).reshape(1, Op)

    matmul_params = pltpu.CompilerParams(
        dimension_semantics=("parallel", "parallel", "arbitrary"),
        vmem_limit_bytes=cfg["vmem_limit"],
    )

    if fuse_weight:
        # 1) Materialize noisy W = mu + sigma * outer(eps_out, eps_in) once.
        w_noisy = pl.pallas_call(
            _build_w_kernel,
            out_shape=jax.ShapeDtypeStruct((Op, Ip), weight_mu_p.dtype),
            grid_spec=pltpu.PrefetchScalarGridSpec(
                num_scalar_prefetch=0,
                grid=(Op // tn, Ip // tk),
                in_specs=[
                    pl.BlockSpec((tn, tk), lambda j, k: (j, k)),   # weight_mu
                    pl.BlockSpec((tn, tk), lambda j, k: (j, k)),   # weight_sig
                    pl.BlockSpec((tn, 1), lambda j, k: (j, 0)),    # eps_out col
                    pl.BlockSpec((1, tk), lambda j, k: (0, k)),    # eps_in row
                ],
                out_specs=pl.BlockSpec((tn, tk), lambda j, k: (j, k)),
            ),
            compiler_params=pltpu.CompilerParams(
                dimension_semantics=("parallel", "parallel"),
                vmem_limit_bytes=cfg["vmem_limit"],
            ),
            cost_estimate=pl.CostEstimate(
                flops=2 * Op * Ip, transcendentals=0,
                bytes_accessed=4 * 3 * Op * Ip),
        )(weight_mu_p, weight_sigma_p, eps_out_p.reshape(Op, 1), eps_in_row)

        # 2) Single-weight matmul with bias epilogue.
        flops = 2 * Bp * Op * Ip
        bytes_accessed = 4 * (Bp * Ip * grid[1] + Op * Ip * grid[0] + Bp * Op)
        out = pl.pallas_call(
            _matmul_bias_kernel,
            out_shape=jax.ShapeDtypeStruct((Bp, Op), x.dtype),
            grid_spec=pltpu.PrefetchScalarGridSpec(
                num_scalar_prefetch=0,
                grid=grid,
                in_specs=[
                    pl.BlockSpec((tm, tk), lambda i, j, k: (i, k)),   # x
                    pl.BlockSpec((tn, tk), lambda i, j, k: (j, k)),   # W noisy
                    pl.BlockSpec((1, tn), lambda i, j, k: (0, j)),    # bias row
                ],
                out_specs=pl.BlockSpec((tm, tn), lambda i, j, k: (i, j)),
                scratch_shapes=[pltpu.VMEM((tm, tn), jnp.float32)],
            ),
            compiler_params=matmul_params,
            cost_estimate=pl.CostEstimate(
                flops=flops, transcendentals=0, bytes_accessed=bytes_accessed),
        )(xp, w_noisy, b_row)
    else:
        # Two-matmul identity form; never materializes the (O, I) noisy W.
        flops = 4 * Bp * Op * Ip
        bytes_accessed = 4 * (Bp * Ip * grid[1] + 2 * Op * Ip * grid[0]
                              + Bp * Op)
        out = pl.pallas_call(
            _identity_kernel,
            out_shape=jax.ShapeDtypeStruct((Bp, Op), x.dtype),
            grid_spec=pltpu.PrefetchScalarGridSpec(
                num_scalar_prefetch=0,
                grid=grid,
                in_specs=[
                    pl.BlockSpec((tm, tk), lambda i, j, k: (i, k)),   # x
                    pl.BlockSpec((tn, tk), lambda i, j, k: (j, k)),   # weight_mu
                    pl.BlockSpec((tn, tk), lambda i, j, k: (j, k)),   # weight_sig
                    pl.BlockSpec((1, tk), lambda i, j, k: (0, k)),    # eps_in row
                    pl.BlockSpec((1, tn), lambda i, j, k: (0, j)),    # eps_out row
                    pl.BlockSpec((1, tn), lambda i, j, k: (0, j)),    # bias row
                ],
                out_specs=pl.BlockSpec((tm, tn), lambda i, j, k: (i, j)),
                scratch_shapes=[pltpu.VMEM((tm, tn), jnp.float32)],
            ),
            compiler_params=matmul_params,
            cost_estimate=pl.CostEstimate(
                flops=flops, transcendentals=0, bytes_accessed=bytes_accessed),
        )(xp, weight_mu_p, weight_sigma_p, eps_in_row,
          eps_out_p.reshape(1, Op), b_row)

    return out[:B, :O]


# ----------------------------------------------------------------------------
# Reference init / noise (matches the PyTorch module)
# ----------------------------------------------------------------------------
def factorized_noise(key, size):
    """PyTorch NoisyLinear._noise: sign(e) * sqrt(|e|) with e ~ N(0,1)."""
    e = jax.random.normal(key, (size,), dtype=jnp.float32)
    return jnp.sign(e) * jnp.sqrt(jnp.abs(e))


def init_noisy_linear_params(key, in_features, out_features):
    """Deterministic init matching NoisyLinear.reset_parameters()."""
    bound = 1.0 / jnp.sqrt(jnp.float32(in_features))
    k1, k2 = jax.random.split(key)
    weight_mu = jax.random.uniform(
        k1, (out_features, in_features), jnp.float32, minval=-bound, maxval=bound)
    bias_mu = jax.random.uniform(
        k2, (out_features,), jnp.float32, minval=-bound, maxval=bound)
    weight_sigma = jnp.full((out_features, in_features), 0.017, jnp.float32)
    bias_sigma = jnp.full((out_features,), 0.017, jnp.float32)
    return weight_mu, weight_sigma, bias_mu, bias_sigma


if __name__ == "__main__":
    def run_case(B, IN, OUT, seed):
        root = jax.random.PRNGKey(seed)
        k_param, k_x, k_ein, k_eout = jax.random.split(root, 4)

        weight_mu, weight_sigma, bias_mu, bias_sigma = init_noisy_linear_params(
            k_param, IN, OUT)
        x = jax.random.normal(k_x, (B, IN), dtype=jnp.float32)

        # Factorized Gaussian noise (drawn fresh each forward in the reference).
        eps_in = factorized_noise(k_ein, IN)
        eps_out = factorized_noise(k_eout, OUT)

        # Pure-JAX reference of the same forward math.
        w_ref = weight_mu + weight_sigma * jnp.outer(eps_out, eps_in)
        b_ref = bias_mu + bias_sigma * eps_out
        y_ref = x @ w_ref.T + b_ref

        # Pad parameters ONCE (init-time), not per forward.
        params_p = pad_noisy_linear_params(weight_mu, weight_sigma,
                                           bias_mu, bias_sigma)

        # False -> identity two-matmul path, True -> materialized-W path,
        # None -> auto-select.
        for fuse in (False, True, None):
            y = noisy_linear(x, *params_p, eps_in, eps_out, fuse_weight=fuse)
            jax.block_until_ready(y)
            assert y.shape == (B, OUT)
            assert jnp.allclose(y, y_ref, atol=1e-4, rtol=1e-4), \
                f"mismatch (B={B}, IN={IN}, OUT={OUT}, fuse_weight={fuse})"

    run_case(B=8, IN=32, OUT=16, seed=0)     # tiny, ragged O/I
    run_case(B=24, IN=100, OUT=72, seed=1)   # ragged everything
    print("KERNEL_OK")
</pallas_src>

<mosaic_0001>
module attributes {stable_mosaic.version = 11 : i64} {
  func.func @_identity_kernel(%arg0: i32, %arg1: i32, %arg2: i32, %arg3: memref<8x128xf32, #tpu.memory_space<vmem>>, %arg4: memref<128x128xf32, #tpu.memory_space<vmem>>, %arg5: memref<128x128xf32, #tpu.memory_space<vmem>>, %arg6: memref<1x128xf32, #tpu.memory_space<vmem>>, %arg7: memref<1x128xf32, #tpu.memory_space<vmem>>, %arg8: memref<1x128xf32, #tpu.memory_space<vmem>>, %arg9: memref<8x128xf32, #tpu.memory_space<vmem>>, %arg10: memref<8x128xf32, #tpu.memory_space<vmem>>) attributes {dimension_semantics = [#tpu.dimension_semantics<parallel>, #tpu.dimension_semantics<parallel>, #tpu.dimension_semantics<arbitrary>], iteration_bounds = array<i64: 1, 1, 1>, scalar_prefetch = 0 : i64, scratch_operands = 1 : i64, tpu.core_type = #tpu.core_type<tc>, window_params = [{transform_indices = @transform_0, window_bounds = array<i64: 8, 128>}, {transform_indices = @transform_1, window_bounds = array<i64: 128, 128>}, {transform_indices = @transform_2, window_bounds = array<i64: 128, 128>}, {transform_indices = @transform_3, window_bounds = array<i64: 1, 128>}, {transform_indices = @transform_4, window_bounds = array<i64: 1, 128>}, {transform_indices = @transform_5, window_bounds = array<i64: 1, 128>}, {transform_indices = @transform_6, window_bounds = array<i64: 8, 128>}]} {
    %c0_i32 = arith.constant 0 : i32
    %0 = arith.cmpi eq, %arg2, %c0_i32 : i32
    %1 = arith.extui %0 : i1 to i32
    %c0_i32_0 = arith.constant 0 : i32
    %2 = arith.cmpi ne, %1, %c0_i32_0 : i32
    scf.if %2 {
      %cst_17 = arith.constant 0.000000e+00 : f32
      %21 = vector.broadcast %cst_17 : f32 to vector<8x128xf32>
      %c0_18 = arith.constant 0 : index
      %c0_19 = arith.constant 0 : index
      %22 = vector.load %arg10[%c0_18, %c0_19] : memref<8x128xf32, #tpu.memory_space<vmem>>, vector<8x128xf32>
      tpu.vector_store %arg10[%c0_18, %c0_19], %21 {strides = array<i32>} : memref<8x128xf32, #tpu.memory_space<vmem>>, vector<8x128xf32>,
    } else {
    }
    %c0 = arith.constant 0 : index
    %c0_1 = arith.constant 0 : index
    %3 = vector.load %arg3[%c0, %c0_1] : memref<8x128xf32, #tpu.memory_space<vmem>>, vector<8x128xf32>
    %c0_2 = arith.constant 0 : index
    %c0_3 = arith.constant 0 : index
    %4 = vector.load %arg4[%c0_2, %c0_3] : memref<128x128xf32, #tpu.memory_space<vmem>>, vector<128x128xf32>
    %cst = arith.constant dense<0.000000e+00> : vector<8x128xf32>
    %5 = tpu.matmul %3, %4, %cst {dimension_numbers = #tpu.dot_dimension_numbers<[1], [1], [0], [0], [0, 0, 1, 0], [], []>} : vector<8x128xf32>, vector<128x128xf32>, vector<8x128xf32> -> vector<8x128xf32>
    %c0_4 = arith.constant 0 : index
    %c0_5 = arith.constant 0 : index
    %6 = vector.load %arg6[%c0_4, %c0_5] : memref<1x128xf32, #tpu.memory_space<vmem>>, vector<1x128xf32>
    %7 = vector.broadcast %6 : vector<1x128xf32> to vector<8x128xf32>
    %8 = arith.mulf %3, %7 : vector<8x128xf32>
    %c0_6 = arith.constant 0 : index
    %c0_7 = arith.constant 0 : index
    %9 = vector.load %arg5[%c0_6, %c0_7] : memref<128x128xf32, #tpu.memory_space<vmem>>, vector<128x128xf32>
    %cst_8 = arith.constant dense<0.000000e+00> : vector<8x128xf32>
    %10 = tpu.matmul %8, %9, %cst_8 {dimension_numbers = #tpu.dot_dimension_numbers<[1], [1], [0], [0], [0, 0, 1, 0], [], []>} : vector<8x128xf32>, vector<128x128xf32>, vector<8x128xf32> -> vector<8x128xf32>
    %c0_9 = arith.constant 0 : index
    %c0_10 = arith.constant 0 : index
    %11 = vector.load %arg10[%c0_9, %c0_10] : memref<8x128xf32, #tpu.memory_space<vmem>>, vector<8x128xf32>
    %c0_11 = arith.constant 0 : index
    %c0_12 = arith.constant 0 : index
    %12 = vector.load %arg7[%c0_11, %c0_12] : memref<1x128xf32, #tpu.memory_space<vmem>>, vector<1x128xf32>
    %13 = vector.broadcast %12 : vector<1x128xf32> to vector<8x128xf32>
    %14 = arith.mulf %10, %13 : vector<8x128xf32>
    %15 = arith.addf %5, %14 : vector<8x128xf32>
    %16 = arith.addf %11, %15 : vector<8x128xf32>
    %c0_13 = arith.constant 0 : index
    %c0_14 = arith.constant 0 : index
    %17 = vector.load %arg10[%c0_13, %c0_14] : memref<8x128xf32, #tpu.memory_space<vmem>>, vector<8x128xf32>
    tpu.vector_store %arg10[%c0_13, %c0_14], %16 {strides = array<i32>} : memref<8x128xf32, #tpu.memory_space<vmem>>, vector<8x128xf32>,
    %c0_i32_15 = arith.constant 0 : i32
    %18 = arith.cmpi eq, %arg2, %c0_i32_15 : i32
    %19 = arith.extui %18 : i1 to i32
    %c0_i32_16 = arith.constant 0 : i32
    %20 = arith.cmpi ne, %19, %c0_i32_16 : i32
    scf.if %20 {
      %c0_17 = arith.constant 0 : index
      %c0_18 = arith.constant 0 : index
      %21 = vector.load %arg10[%c0_17, %c0_18] : memref<8x128xf32, #tpu.memory_space<vmem>>, vector<8x128xf32>
      %c0_19 = arith.constant 0 : index
      %c0_20 = arith.constant 0 : index
      %22 = vector.load %arg8[%c0_19, %c0_20] : memref<1x128xf32, #tpu.memory_space<vmem>>, vector<1x128xf32>
      %23 = vector.broadcast %22 : vector<1x128xf32> to vector<8x128xf32>
      %24 = arith.addf %21, %23 : vector<8x128xf32>
      %c0_21 = arith.constant 0 : index
      %c0_22 = arith.constant 0 : index
      %25 = vector.load %arg9[%c0_21, %c0_22] : memref<8x128xf32, #tpu.memory_space<vmem>>, vector<8x128xf32>
      tpu.vector_store %arg9[%c0_21, %c0_22], %24 {strides = array<i32>} : memref<8x128xf32, #tpu.memory_space<vmem>>, vector<8x128xf32>,
    } else {
    }
    return
  }
  func.func @transform_0(%arg0: i32, %arg1: i32, %arg2: i32) -> (i32, i32) {
    %c0_i32 = arith.constant 0 : i32
    return %arg0, %arg2 : i32, i32
  }
  func.func @transform_1(%arg0: i32, %arg1: i32, %arg2: i32) -> (i32, i32) {
    %c0_i32 = arith.constant 0 : i32
    return %arg1, %arg2 : i32, i32
  }
  func.func @transform_2(%arg0: i32, %arg1: i32, %arg2: i32) -> (i32, i32) {
    %c0_i32 = arith.constant 0 : i32
    return %arg1, %arg2 : i32, i32
  }
  func.func @transform_3(%arg0: i32, %arg1: i32, %arg2: i32) -> (i32, i32) {
    %c0_i32 = arith.constant 0 : i32
    %c0_i32_0 = arith.constant 0 : i32
    return %c0_i32, %arg2 : i32, i32
  }
  func.func @transform_4(%arg0: i32, %arg1: i32, %arg2: i32) -> (i32, i32) {
    %c0_i32 = arith.constant 0 : i32
    %c0_i32_0 = arith.constant 0 : i32
    return %c0_i32, %arg1 : i32, i32
  }
  func.func @transform_5(%arg0: i32, %arg1: i32, %arg2: i32) -> (i32, i32) {
    %c0_i32 = arith.constant 0 : i32
    %c0_i32_0 = arith.constant 0 : i32
    return %c0_i32, %arg1 : i32, i32
  }
  func.func @transform_6(%arg0: i32, %arg1: i32, %arg2: i32) -> (i32, i32) {
    %c0_i32 = arith.constant 0 : i32
    return %arg0, %arg1 : i32, i32
  }
}

</mosaic_0001>

<llo_original>
// kernel: noisy_linear.1
$region0: #{noisy_linear.1}
  #allocation0 [shape = 'u32[]', space=smem, size = 0x4, offset = 0x4, fixed_abs, tag = 'smem constant byte address 0x4 - core index']
  #allocation1 [shape = 'u32[144,128]{1,0:T(1,128)}', space=vmem, size = 0x12000, scoped, tag = 'internal scratch']
  #allocation2 [shape = 'f32[8,128]{1,0:T(8,128)}', space=vmem, size = 0x1000, scoped, tag = 'scratch operand']
  %s0 = inlined_call_operand.vmem [shape: f32[8,128], index: 0, kind: input, shape index: {}]
  %s1 = inlined_call_operand.hbm [shape: f32[128,128], index: 1, kind: input, shape index: {}]
  %s2 = inlined_call_operand.hbm [shape: f32[128,128], index: 2, kind: input, shape index: {}]
  %s3 = inlined_call_operand.vmem [shape: f32[1,128], index: 3, kind: input, shape index: {}]
  %s4 = inlined_call_operand.vmem [shape: f32[1,128], index: 4, kind: input, shape index: {}]
  %s5 = inlined_call_operand.vmem [shape: f32[1,128], index: 5, kind: input, shape index: {}]
  %s6 = inlined_call_operand.hbm [shape: f32[8,128], index: 6, kind: output, shape index: {}]
  %s7 = sld [smem:[#allocation0]]
  $region50: #{noisy_linear.1} parent=0
    _
  %s9 = ssub.s32 1, %s7
  %s10 = scalar_select 0, %s9, %s7
  $region1: #{noisy_linear.1} parent=0
    #allocation3 [shape = 'u8[65536]{0}', space=vmem, size = 0x10000, scoped, tag = 'input window, operand 1, single buffered']
    #allocation4 [shape = 's32[1]{0}', space=sflag, size = 0x4, scoped, tag = 'scoped memory for noisy_linear.1']
    #allocation5 [shape = 's32[1]{0}', space=sflag, size = 0x4, scoped, tag = 'scoped memory for noisy_linear.1']
    #allocation6 [shape = 'u8[65536]{0}', space=vmem, size = 0x10000, scoped, tag = 'input window, operand 2, single buffered']
    #allocation7 [shape = 's32[1]{0}', space=sflag, size = 0x4, scoped, tag = 'scoped memory for noisy_linear.1']
    #allocation8 [shape = 'u8[4096]{0}', space=vmem, size = 0x1000, scoped, tag = 'output window, operand 0, single buffered']
    %11 = vsyncpa [#allocation4], 0
    %12 = vsyncpa [#allocation7], 0
    %13 = vsyncpa [#allocation5], 0
    // Predicated region
    $region2: #{noisy_linear.1} parent=1 // pred_check
      _
    $region3: #{noisy_linear.1} parent=1 // pred_check_branch
      %15 = sbr.rel (0) target = $region5
    $region4: #{noisy_linear.1} parent=1 // pred_region
      _
    $region5: #{noisy_linear.1} parent=1 // pred_fallthru
      _
    // Predicated region
    $region6: #{noisy_linear.1} parent=1 // pred_check
      _
    $region7: #{noisy_linear.1} parent=1 // pred_check_branch
      %17 = sbr.rel (0) target = $region9
    $region8: #{noisy_linear.1} parent=1 // pred_region
      %s19 = ssub.s32 2048, 2048
      %20 = vsyncadd [#allocation4], %s19
      %s21 = sshll.u32 [#allocation3], 4
      %s22 = int_to_ptr.vmem [resolvable:$true] %s21
      %27 = dma.hbm_to_vmem [thread:$0]  %s1, 2048, %s22, [#allocation4], 128, 128, 8
    $region9: #{noisy_linear.1} parent=1 // pred_fallthru
      _
    // Predicated region
    $region10: #{noisy_linear.1} parent=1 // pred_check
      _
    $region11: #{noisy_linear.1} parent=1 // pred_check_branch
      %29 = sbr.rel (0) target = $region13
    $region12: #{noisy_linear.1} parent=1 // pred_region
      %s31 = ssub.s32 2048, 2048
      %32 = vsyncadd [#allocation7], %s31
      %s33 = sshll.u32 [#allocation6], 4
      %s34 = int_to_ptr.vmem [resolvable:$true] %s33
      %39 = dma.hbm_to_vmem [thread:$0]  %s2, 2048, %s34, [#allocation7], 128, 128, 8
    $region13: #{noisy_linear.1} parent=1 // pred_fallthru
      _
    // Predicated region
    $region14: #{noisy_linear.1} parent=1 // pred_check
      _
    $region15: #{noisy_linear.1} parent=1 // pred_check_branch
      %41 = sbr.rel (0) target = $region17
    $region16: #{noisy_linear.1} parent=1 // pred_region
      _
    $region17: #{noisy_linear.1} parent=1 // pred_fallthru
      _
    // Predicated region
    $region18: #{noisy_linear.1} parent=1 // pred_check
      _
    $region19: #{noisy_linear.1} parent=1 // pred_check_branch
      %43 = sbr.rel (0) target = $region21
    $region20: #{noisy_linear.1} parent=1 // pred_region
      _
    $region21: #{noisy_linear.1} parent=1 // pred_fallthru
      _
    // Predicated region
    $region22: #{noisy_linear.1} parent=1 // pred_check
      _
    $region23: #{noisy_linear.1} parent=1 // pred_check_branch
      %45 = sbr.rel (0) target = $region25
    $region24: #{noisy_linear.1} parent=1 // pred_region
      _
    $region25: #{noisy_linear.1} parent=1 // pred_fallthru
      _
    // Predicated region
    $region26: #{noisy_linear.1} parent=1 // pred_check
      _
    $region27: #{noisy_linear.1} parent=1 // pred_check_branch
      %47 = sbr.rel (0) target = $region29
    $region28: #{noisy_linear.1} parent=1 // pred_region
      %48 = dma.done [#allocation4], 2048
    $region29: #{noisy_linear.1} parent=1 // pred_fallthru
      _
    // Predicated region
    $region30: #{noisy_linear.1} parent=1 // pred_check
      _
    $region31: #{noisy_linear.1} parent=1 // pred_check_branch
      %50 = sbr.rel (0) target = $region33
    $region32: #{noisy_linear.1} parent=1 // pred_region
      %51 = dma.done [#allocation7], 2048
    $region33: #{noisy_linear.1} parent=1 // pred_fallthru
      _
    %p52 = scmp.eq.s32.totalorder 0, 0
    // Predicated region
    $region34: #{noisy_linear.1} parent=1 // pred_check
      %p53 = pneg %p52
    $region35: #{noisy_linear.1} parent=1 // pred_check_branch
      %55 = sbr.rel (%p53) target = $region37
    $region36: #{noisy_linear.1} parent=1 // pred_region
      %56 = vst [vmem:[#allocation2] sm:$0xff] 0.0
    $region37: #{noisy_linear.1} parent=1 // pred_fallthru
      _
    %v57 = vld [vmem:[%s0] sm:$0xff]
    %v58 = vld [vmem:[#allocation3] sm:$0xff]
    %v59 = vld [vmem:[#allocation3 + $0x8] sm:$0xff]
    %v60 = vld [vmem:[#allocation3 + $0x10] sm:$0xff]
    %v61 = vld [vmem:[#allocation3 + $0x18] sm:$0xff]
    %v62 = vld [vmem:[#allocation3 + $0x20] sm:$0xff]
    %v63 = vld [vmem:[#allocation3 + $0x28] sm:$0xff]
    %v64 = vld [vmem:[#allocation3 + $0x30] sm:$0xff]
    %v65 = vld [vmem:[#allocation3 + $0x38] sm:$0xff]
    %v66 = vld [vmem:[#allocation3 + $0x40] sm:$0xff]
    %v67 = vld [vmem:[#allocation3 + $0x48] sm:$0xff]
    %v68 = vld [vmem:[#allocation3 + $0x50] sm:$0xff]
    %v69 = vld [vmem:[#allocation3 + $0x58] sm:$0xff]
    %v70 = vld [vmem:[#allocation3 + $0x60] sm:$0xff]
    %v71 = vld [vmem:[#allocation3 + $0x68] sm:$0xff]
    %v72 = vld [vmem:[#allocation3 + $0x70] sm:$0xff]
    %v73 = vld [vmem:[#allocation3 + $0x78] sm:$0xff]
    %v74 = vld [vmem:[%s3] sm:$0x1]
    %v76 = vlaneseq
    %v77 = vshrl.u32 %v76, 7
    %v78 = vsub.s32 0, %v77
    %v79 = vrot.slane %v74, %v78
    %v81 = vmul.f32 %v57, %v79
    %v82 = vld [vmem:[#allocation6] sm:$0xff]
    %v83 = vld [vmem:[#allocation6 + $0x8] sm:$0xff]
    %v84 = vld [vmem:[#allocation6 + $0x10] sm:$0xff]
    %v85 = vld [vmem:[#allocation6 + $0x18] sm:$0xff]
    %v86 = vld [vmem:[#allocation6 + $0x20] sm:$0xff]
    %v87 = vld [vmem:[#allocation6 + $0x28] sm:$0xff]
    %v88 = vld [vmem:[#allocation6 + $0x30] sm:$0xff]
    %v89 = vld [vmem:[#allocation6 + $0x38] sm:$0xff]
    %v90 = vld [vmem:[#allocation6 + $0x40] sm:$0xff]
    %v91 = vld [vmem:[#allocation6 + $0x48] sm:$0xff]
    %v92 = vld [vmem:[#allocation6 + $0x50] sm:$0xff]
    %v93 = vld [vmem:[#allocation6 + $0x58] sm:$0xff]
    %v94 = vld [vmem:[#allocation6 + $0x60] sm:$0xff]
    %v95 = vld [vmem:[#allocation6 + $0x68] sm:$0xff]
    %v96 = vld [vmem:[#allocation6 + $0x70] sm:$0xff]
    %v97 = vld [vmem:[#allocation6 + $0x78] sm:$0xff]
    %98 = vmatprep.subr.mxu0 0.0
    %99 = vmatpush1.xpose.msra.mxu0 %v82
    %100 = vmatprep.subr.mxu0 0.0
    %101 = vmatpush1.xpose.msra.mxu0 %v83
    %102 = vmatprep.subr.mxu0 0.0
    %103 = vmatpush1.xpose.msra.mxu0 %v84
    %104 = vmatprep.subr.mxu0 0.0
    %105 = vmatpush1.xpose.msra.mxu0 %v85
    %106 = vmatprep.subr.mxu0 0.0
    %107 = vmatpush1.xpose.msra.mxu0 %v86
    %108 = vmatprep.subr.mxu0 0.0
    %109 = vmatpush1.xpose.msra.mxu0 %v87
    %110 = vmatprep.subr.mxu0 0.0
    %111 = vmatpush1.xpose.msra.mxu0 %v88
    %112 = vmatprep.subr.mxu0 0.0
    %113 = vmatpush1.xpose.msra.mxu0 %v89
    %114 = vmatprep.subr.mxu0 0.0
    %115 = vmatpush1.xpose.msra.mxu0 %v90
    %116 = vmatprep.subr.mxu0 0.0
    %117 = vmatpush1.xpose.msra.mxu0 %v91
    %118 = vmatprep.subr.mxu0 0.0
    %119 = vmatpush1.xpose.msra.mxu0 %v92
    %120 = vmatprep.subr.mxu0 0.0
    %121 = vmatpush1.xpose.msra.mxu0 %v93
    %122 = vmatprep.subr.mxu0 0.0
    %123 = vmatpush1.xpose.msra.mxu0 %v94
    %124 = vmatprep.subr.mxu0 0.0
    %125 = vmatpush1.xpose.msra.mxu0 %v95
    %126 = vmatprep.subr.mxu0 0.0
    %127 = vmatpush1.xpose.msra.mxu0 %v96
    %128 = vmatprep.subr.mxu0 0.0
    %129 = vmatpush1.xpose.msra.mxu0 %v97
    %130 = vmatprep.subr.mxu0 0.0
    %131 = vmatpush1.xpose.msra.mxu0 0.0
    %132 = vmatprep.subr.mxu0 0.0
    %133 = vmatpush1.xpose.msra.mxu0 0.0
    %134 = vmatprep.subr.mxu0 0.0
    %135 = vmatpush1.xpose.msra.mxu0 0.0
    %136 = vmatprep.subr.mxu0 0.0
    %137 = vmatpush1.xpose.msra.mxu0 0.0
    %138 = vmatprep.subr.mxu0 0.0
    %139 = vmatpush1.xpose.msra.mxu0 0.0
    %140 = vmatprep.subr.mxu0 0.0
    %141 = vmatpush1.xpose.msra.mxu0 0.0
    %142 = vmatprep.subr.mxu0 0.0
    %143 = vmatpush1.xpose.msra.mxu0 0.0
    %144 = vmatprep.subr.mxu0 0.0
    %145 = vmatpush1.xpose.msra.mxu0 0.0
    %146 = vmatprep.subr.mxu0 0.0
    %147 = vmatpush1.xpose.msra.mxu0 0.0
    %148 = vmatprep.subr.mxu0 0.0
    %149 = vmatpush1.xpose.msra.mxu0 0.0
    %150 = vmatprep.subr.mxu0 0.0
    %151 = vmatpush1.xpose.msra.mxu0 0.0
    %152 = vmatprep.subr.mxu0 0.0
    %153 = vmatpush1.xpose.msra.mxu0 0.0
    %154 = vmatprep.subr.mxu0 0.0
    %155 = vmatpush1.xpose.msra.mxu0 0.0
    %156 = vmatprep.subr.mxu0 0.0
    %157 = vmatpush1.xpose.msra.mxu0 0.0
    %158 = vmatprep.subr.mxu0 0.0
    %159 = vmatpush1.xpose.msra.mxu0 0.0
    %160 = vmatprep.subr.mxu0 0.0
    %161 = vmatpush1.xpose.msra.mxu0 0.0
    %162 = vmatprep.mubr.f32.mxu0 0.0
    %163 = vmatmul.mubr.f32.gmra.mrb[0].mxu0 %v81
    %v164 = vpop.f32.mrb[0].mxu0
    %v165 = vadd.f32 0.0, %v164
    %v166 = vpop.f32.mrb[0].mxu0
    %167 = vdwg.mxu0
    %v168 = vld [vmem:[#allocation2] sm:$0xff]
    %v169 = vld [vmem:[%s4] sm:$0x1]
    %v171 = vlaneseq
    %v172 = vshrl.u32 %v171, 7
    %v173 = vsub.s32 0, %v172
    %v174 = vrot.slane %v169, %v173
    %v176 = vmul.f32 %v165, %v174
    %177 = vmatprep.subr.mxu0 0.0
    %178 = vmatpush1.xpose.msra.mxu0 %v58
    %179 = vmatprep.subr.mxu0 0.0
    %180 = vmatpush1.xpose.msra.mxu0 %v59
    %181 = vmatprep.subr.mxu0 0.0
    %182 = vmatpush1.xpose.msra.mxu0 %v60
    %183 = vmatprep.subr.mxu0 0.0
    %184 = vmatpush1.xpose.msra.mxu0 %v61
    %185 = vmatprep.subr.mxu0 0.0
    %186 = vmatpush1.xpose.msra.mxu0 %v62
    %187 = vmatprep.subr.mxu0 0.0
    %188 = vmatpush1.xpose.msra.mxu0 %v63
    %189 = vmatprep.subr.mxu0 0.0
    %190 = vmatpush1.xpose.msra.mxu0 %v64
    %191 = vmatprep.subr.mxu0 0.0
    %192 = vmatpush1.xpose.msra.mxu0 %v65
    %193 = vmatprep.subr.mxu0 0.0
    %194 = vmatpush1.xpose.msra.mxu0 %v66
    %195 = vmatprep.subr.mxu0 0.0
    %196 = vmatpush1.xpose.msra.mxu0 %v67
    %197 = vmatprep.subr.mxu0 0.0
    %198 = vmatpush1.xpose.msra.mxu0 %v68
    %199 = vmatprep.subr.mxu0 0.0
    %200 = vmatpush1.xpose.msra.mxu0 %v69
    %201 = vmatprep.subr.mxu0 0.0
    %202 = vmatpush1.xpose.msra.mxu0 %v70
    %203 = vmatprep.subr.mxu0 0.0
    %204 = vmatpush1.xpose.msra.mxu0 %v71
    %205 = vmatprep.subr.mxu0 0.0
    %206 = vmatpush1.xpose.msra.mxu0 %v72
    %207 = vmatprep.subr.mxu0 0.0
    %208 = vmatpush1.xpose.msra.mxu0 %v73
    %209 = vmatprep.subr.mxu0 0.0
    %210 = vmatpush1.xpose.msra.mxu0 0.0
    %211 = vmatprep.subr.mxu0 0.0
    %212 = vmatpush1.xpose.msra.mxu0 0.0
    %213 = vmatprep.subr.mxu0 0.0
    %214 = vmatpush1.xpose.msra.mxu0 0.0
    %215 = vmatprep.subr.mxu0 0.0
    %216 = vmatpush1.xpose.msra.mxu0 0.0
    %217 = vmatprep.subr.mxu0 0.0
    %218 = vmatpush1.xpose.msra.mxu0 0.0
    %219 = vmatprep.subr.mxu0 0.0
    %220 = vmatpush1.xpose.msra.mxu0 0.0
    %221 = vmatprep.subr.mxu0 0.0
    %222 = vmatpush1.xpose.msra.mxu0 0.0
    %223 = vmatprep.subr.mxu0 0.0
    %224 = vmatpush1.xpose.msra.mxu0 0.0
    %225 = vmatprep.subr.mxu0 0.0
    %226 = vmatpush1.xpose.msra.mxu0 0.0
    %227 = vmatprep.subr.mxu0 0.0
    %228 = vmatpush1.xpose.msra.mxu0 0.0
    %229 = vmatprep.subr.mxu0 0.0
    %230 = vmatpush1.xpose.msra.mxu0 0.0
    %231 = vmatprep.subr.mxu0 0.0
    %232 = vmatpush1.xpose.msra.mxu0 0.0
    %233 = vmatprep.subr.mxu0 0.0
    %234 = vmatpush1.xpose.msra.mxu0 0.0
    %235 = vmatprep.subr.mxu0 0.0
    %236 = vmatpush1.xpose.msra.mxu0 0.0
    %237 = vmatprep.subr.mxu0 0.0
    %238 = vmatpush1.xpose.msra.mxu0 0.0
    %239 = vmatprep.subr.mxu0 0.0
    %240 = vmatpush1.xpose.msra.mxu0 0.0
    %241 = vmatprep.mubr.f32.mxu0 0.0
    %242 = vmatmul.mubr.f32.gmra.mrb[0].mxu0 %v57
    %v243 = vpop.f32.mrb[0].mxu0
    %v244 = vadd.f32 %v176, %v243
    %v245 = vpop.f32.mrb[0].mxu0
    %246 = vdwg.mxu0
    %v247 = vadd.f32 %v168, %v244
    %248 = vst [vmem:[#allocation2] sm:$0xff] %v247
    // Predicated region
    $region38: #{noisy_linear.1} parent=1 // pred_check
      %p249 = pneg %p52
    $region39: #{noisy_linear.1} parent=1 // pred_check_branch
      %251 = sbr.rel (%p249) target = $region41
    $region40: #{noisy_linear.1} parent=1 // pred_region
      %v252 = vld [vmem:[#allocation2] sm:$0xff]
      %v253 = vld [vmem:[%s5] sm:$0x1]
      %v255 = vlaneseq
      %v256 = vshrl.u32 %v255, 7
      %v257 = vsub.s32 0, %v256
      %v258 = vrot.slane %v253, %v257
      %v260 = vadd.f32 %v252, %v258
      %261 = vst [vmem:[#allocation8] sm:$0xff] %v260
    $region41: #{noisy_linear.1} parent=1 // pred_fallthru
      _
    // Predicated region
    $region42: #{noisy_linear.1} parent=1 // pred_check
      _
    $region43: #{noisy_linear.1} parent=1 // pred_check_branch
      %263 = sbr.rel (0) target = $region45
    $region44: #{noisy_linear.1} parent=1 // pred_region
      %s265 = ssub.s32 128, 128
      %266 = vsyncadd [#allocation5], %s265
      %s268 = sshll.u32 [#allocation8], 4
      %s269 = int_to_ptr.vmem [resolvable:$true] %s268
      %271 = dma.vmem_to_hbm [thread:$0]  %s269, 128, %s6, [#allocation5]
    $region45: #{noisy_linear.1} parent=1 // pred_fallthru
      _
    // Predicated region
    $region46: #{noisy_linear.1} parent=1 // pred_check
      _
    $region47: #{noisy_linear.1} parent=1 // pred_check_branch
      %273 = sbr.rel (0) target = $region49
    $region48: #{noisy_linear.1} parent=1 // pred_region
      %274 = dma.done [#allocation5], 128
    $region49: #{noisy_linear.1} parent=1 // pred_fallthru
      _
    %275 = vsyncpa [#allocation4], 1
    %276 = vsyncpa [#allocation7], 1
    %277 = vsyncpa [#allocation5], 1

</llo_original>
